<compile_context>
chip_gen: v7x
topology: tpu7x:2x2x1
jax: 0.10.0
libtpu: 0.0.40
codegen_flags: <defaults>
</compile_context>

<pallas_src>
import functools

import jax
import jax.numpy as jnp
from jax.experimental import pallas as pl
from jax.experimental.pallas import tpu as pltpu


# JAX analogue of the PyTorch act_map().
_JAX_ACT = {
    "linear": lambda x: x,
    "elu": jax.nn.elu,
    "sigmoid": jax.nn.sigmoid,
    "tanh": jnp.tanh,
    "relu": jax.nn.relu,
    "relu6": jax.nn.relu6,
    "softplus": jax.nn.softplus,
    "leaky_relu": jax.nn.leaky_relu,
    # TODO(synk): 'prelu' needs a learned parameter (nn.PReLU); not supported.
}


def _apply_act(x, act):
    if act not in _JAX_ACT:
        raise Exception("wrong activate function")
    return _JAX_ACT[act](x)


def _round_up(v, m):
    return ((v + m - 1) // m) * m


def _na_kernel(mask_ref, fi_ref, fk_ref,          # scalar-prefetch (SMEM)
               a_ref, xw_ref, res_ref,            # inputs (VMEM tiles)
               o_ref,                             # output tile
               acc_ref, *, act):                  # f32 VMEM accumulator
    # a_ref  : [TN, TK]  bf16/f32 adjacency tile  A[dst_tile, src_tile]
    # xw_ref : [TK, Do]  precomputed (x @ W) tile (same dtype as A)
    # res_ref: [TN, Do]  f32 residual/bias slab   b [+ x @ Wl + bl]
    # o_ref  : [TN, Do]
    i = pl.program_id(0)
    k = pl.program_id(1)
    nk = pl.num_programs(1)

    @pl.when(k == 0)
    def _():
        acc_ref[...] = jnp.zeros_like(acc_ref)

    # Skip all-zero adjacency tiles entirely (their block index was also
    # remapped to the previously fetched block, so no DMA was issued).
    @pl.when(mask_ref[i, k] != 0)
    def _():
        acc_ref[...] += jnp.dot(a_ref[...], xw_ref[...],
                                preferred_element_type=jnp.float32)

    @pl.when(k == nk - 1)
    def _():
        h = acc_ref[...] + res_ref[...]
        o_ref[...] = _apply_act(h, act).astype(o_ref.dtype)


def na_op(x, edge_index, edge_weights, edge_attr, params, *,
          act="relu", with_linear=True, with_act=True,
          tile_n=256, tile_k=512, compute_dtype=jnp.bfloat16):
    """Pallas implementation of NaOp.forward(x, edge_index, edge_weights, edge_attr)."""
    del edge_attr  # TODO(synk): unused by the implemented aggregation primitive.
    if not with_act:
        act = "linear"
    if act not in _JAX_ACT:
        raise Exception("wrong activate function")

    f32 = jnp.float32
    n, din = x.shape
    dout = params["w"].shape[1]

    # ---- tile / padding plan (lane-dense everywhere) ----------------------
    tile_n = _round_up(max(8, min(int(tile_n), _round_up(n, 8))), 8)
    tile_k = _round_up(max(128, min(int(tile_k), _round_up(n, 128))), 128)
    dout_pad = _round_up(dout, 128)
    n_rows = _round_up(n, tile_n)      # destination-node (output row) padding
    n_cols = _round_up(n, tile_k)      # source-node (contraction) padding
    ni, nk = n_rows // tile_n, n_cols // tile_k

    # ---- wrapper-side precompute ------------------------------------------
    # Dense weighted adjacency A[dst, src] = edge_weight.  The data-dependent
    # per-edge scatter-add has no clean Pallas equivalent; build it once here.
    adj_f32 = jnp.zeros((n_rows, n_cols), f32).at[
        edge_index[1], edge_index[0]].add(edge_weights.astype(f32))

    # Tile-level sparsity map + "previous fetched block" remap (row-major grid
    # order, K fastest) so empty tiles issue no new DMA.
    blocks = adj_f32.reshape(ni, tile_n, nk, tile_k)
    mask = jnp.any(blocks != 0, axis=(1, 3))                     # [ni, nk] bool
    flat = mask.reshape(-1)
    step_ids = jnp.arange(ni * nk, dtype=jnp.int32)
    last_nz = jax.lax.cummax(jnp.where(flat, step_ids, -1), axis=0)
    last_nz = jnp.maximum(last_nz, 0)                            # before 1st nz -> (0,0)
    fetch_i = (last_nz // nk).reshape(ni, nk).astype(jnp.int32)
    fetch_k = (last_nz % nk).reshape(ni, nk).astype(jnp.int32)
    mask_i32 = mask.astype(jnp.int32)

    adj = adj_f32.astype(compute_dtype)                          # bf16 HBM stream

    # Fold the weight matmuls into the wrapper: (A @ x) @ W == A @ (x @ W).
    w = params["w"].astype(f32)
    b = params["b"].astype(f32).reshape(1, dout)
    if dout_pad != dout:
        w = jnp.pad(w, ((0, 0), (0, dout_pad - dout)))
        b = jnp.pad(b, ((0, 0), (0, dout_pad - dout)))
    x_cols = x.astype(f32)
    if n_cols != n:
        x_cols = jnp.pad(x_cols, ((0, n_cols - n), (0, 0)))
    xw = (x_cols @ w).astype(compute_dtype)                      # [n_cols, dout_pad]

    # Residual / bias slab stays f32 (added to the f32 accumulator).
    if with_linear:
        wl = params["wl"].astype(f32)
        bl = params["bl"].astype(f32).reshape(1, dout)
        if dout_pad != dout:
            wl = jnp.pad(wl, ((0, 0), (0, dout_pad - dout)))
            bl = jnp.pad(bl, ((0, 0), (0, dout_pad - dout)))
        x_rows = x.astype(f32)
        if n_rows != n:
            x_rows = jnp.pad(x_rows, ((0, n_rows - n), (0, 0)))
        res = (x_rows @ wl + bl + b).astype(f32)                 # [n_rows, dout_pad]
    else:
        res = jnp.broadcast_to(b, (n_rows, dout_pad)).astype(f32)

    # ---- explicit VMEM budget (fits the 64 MiB v7x ceiling) ----------------
    a_bytes = jnp.dtype(compute_dtype).itemsize
    out_bytes = jnp.dtype(x.dtype).itemsize
    vmem_bytes = (2 * tile_n * tile_k * a_bytes        # A tile, double-buffered
                  + 2 * tile_k * dout_pad * a_bytes    # xw tile
                  + 2 * tile_n * dout_pad * 4          # res tile (f32)
                  + 2 * tile_n * dout_pad * out_bytes  # out tile
                  + tile_n * dout_pad * 4)             # accumulator
    vmem_limit = min(max(2 * vmem_bytes + (4 << 20), 32 << 20), 64 << 20)

    kernel = functools.partial(_na_kernel, act=act)

    out_padded = pl.pallas_call(
        kernel,
        out_shape=jax.ShapeDtypeStruct((n_rows, dout_pad), x.dtype),
        grid_spec=pltpu.PrefetchScalarGridSpec(
            num_scalar_prefetch=3,
            grid=(ni, nk),
            in_specs=[
                # A tile; empty tiles map to the previously fetched block.
                pl.BlockSpec((tile_n, tile_k),
                             lambda i, k, m, fi, fk: (fi[i, k], fk[i, k])),
                # (x @ W) tile, indexed by the (remapped) contraction block.
                pl.BlockSpec((tile_k, dout_pad),
                             lambda i, k, m, fi, fk: (fk[i, k], 0)),
                # Residual / bias slab for this destination-row tile.
                pl.BlockSpec((tile_n, dout_pad),
                             lambda i, k, m, fi, fk: (i, 0)),
            ],
            out_specs=pl.BlockSpec((tile_n, dout_pad),
                                   lambda i, k, m, fi, fk: (i, 0)),
            scratch_shapes=[pltpu.VMEM((tile_n, dout_pad), jnp.float32)],
        ),
        compiler_params=pltpu.CompilerParams(
            dimension_semantics=("parallel", "arbitrary"),
            vmem_limit_bytes=int(vmem_limit)),
    )(mask_i32, fetch_i, fetch_k, adj, xw, res)

    return out_padded[:n, :dout]


def na_op_reference(x, edge_index, edge_weights, edge_attr, params, *,
                    act="relu", with_linear=True, with_act=True):
    """Pure-JAX reference for correctness checking."""
    del edge_attr
    if not with_act:
        act = "linear"
    n = x.shape[0]
    adj = jnp.zeros((n, n), jnp.float32).at[edge_index[1], edge_index[0]].add(
        edge_weights.astype(jnp.float32))
    h = (adj @ x) @ params["w"] + params["b"]
    if with_linear:
        h = h + x @ params["wl"] + params["bl"]
    return _apply_act(h, act).astype(x.dtype)


def init_params(key, in_dim, out_dim):
    k1, k2, k3, k4 = jax.random.split(key, 4)
    s = 1.0 / (in_dim ** 0.5)
    return {
        "w": jax.random.uniform(k1, (in_dim, out_dim), jnp.float32, -s, s),
        "b": jax.random.uniform(k2, (1, out_dim), jnp.float32, -s, s),
        "wl": jax.random.uniform(k3, (in_dim, out_dim), jnp.float32, -s, s),
        "bl": jax.random.uniform(k4, (1, out_dim), jnp.float32, -s, s),
    }


if __name__ == "__main__":
    key = jax.random.PRNGKey(0)
    k_p, k_x, k_src, k_dst, k_ew, k_ea = jax.random.split(key, 6)

    # Small, lane-friendly shapes.  num_nodes is deliberately NOT a multiple of
    # the tile size (exercises padding) and edges are confined to the first 256
    # nodes so that most (tile_n x tile_k) adjacency tiles are empty and the
    # scalar-prefetch tile-skip path is exercised.
    num_nodes, in_dim, out_dim, num_edges = 500, 128, 128, 1024
    active_nodes = 256

    params = init_params(k_p, in_dim, out_dim)
    x = jax.random.normal(k_x, (num_nodes, in_dim), jnp.float32)
    src = jax.random.randint(k_src, (num_edges,), 0, active_nodes)
    dst = jax.random.randint(k_dst, (num_edges,), 0, active_nodes)
    edge_index = jnp.stack([src, dst], axis=0)                    # [2, E]
    edge_weights = jax.random.uniform(k_ew, (num_edges,), jnp.float32)
    edge_attr = jax.random.normal(k_ea, (num_edges, 8), jnp.float32)  # unused

    ref = na_op_reference(x, edge_index, edge_weights, edge_attr, params,
                          act="relu", with_linear=True)

    # Default bf16 streaming path (all generations), f32 accumulation.
    out_bf16 = na_op(x, edge_index, edge_weights, edge_attr, params,
                     act="relu", with_linear=True, tile_n=128, tile_k=128,
                     compute_dtype=jnp.bfloat16)
    out_bf16 = jax.block_until_ready(out_bf16)
    assert out_bf16.shape == (num_nodes, out_dim)
    assert jnp.allclose(out_bf16, ref, atol=1e-1, rtol=1e-1), "bf16 mismatch vs reference"

    # f32 streaming path, tight tolerance.
    out_f32 = na_op(x, edge_index, edge_weights, edge_attr, params,
                    act="relu", with_linear=True, tile_n=128, tile_k=128,
                    compute_dtype=jnp.float32)
    out_f32 = jax.block_until_ready(out_f32)
    assert jnp.allclose(out_f32, ref, atol=2e-3, rtol=2e-3), "f32 mismatch vs reference"

    # with_linear=False + a different activation.
    out_nl = na_op(x, edge_index, edge_weights, edge_attr, params,
                   act="elu", with_linear=False, tile_n=128, tile_k=128)
    out_nl = jax.block_until_ready(out_nl)
    ref_nl = na_op_reference(x, edge_index, edge_weights, edge_attr, params,
                             act="elu", with_linear=False)
    assert jnp.allclose(out_nl, ref_nl, atol=1e-1, rtol=1e-1), "no-linear mismatch"

    print("KERNEL_OK")
</pallas_src>

<mosaic_0001>
module attributes {stable_mosaic.version = 11 : i64} {
  func.func @_na_kernel(%arg0: i32, %arg1: i32, %arg2: memref<4x4xi32, #tpu.memory_space<smem>>, %arg3: memref<4x4xi32, #tpu.memory_space<smem>>, %arg4: memref<4x4xi32, #tpu.memory_space<smem>>, %arg5: memref<128x128xbf16, #tpu.memory_space<vmem>>, %arg6: memref<128x128xbf16, #tpu.memory_space<vmem>>, %arg7: memref<128x128xf32, #tpu.memory_space<vmem>>, %arg8: memref<128x128xf32, #tpu.memory_space<vmem>>, %arg9: memref<128x128xf32, #tpu.memory_space<vmem>>) attributes {dimension_semantics = [#tpu.dimension_semantics<parallel>, #tpu.dimension_semantics<arbitrary>], iteration_bounds = array<i64: 4, 4>, scalar_prefetch = 3 : i64, scratch_operands = 1 : i64, tpu.core_type = #tpu.core_type<tc>, window_params = [{transform_indices = @transform_0, window_bounds = array<i64: 128, 128>}, {transform_indices = @transform_1, window_bounds = array<i64: 128, 128>}, {transform_indices = @transform_2, window_bounds = array<i64: 128, 128>}, {transform_indices = @transform_3, window_bounds = array<i64: 128, 128>}]} {
    %c0_i32 = arith.constant 0 : i32
    %0 = arith.cmpi eq, %arg1, %c0_i32 : i32
    %1 = arith.extui %0 : i1 to i32
    %c0_i32_0 = arith.constant 0 : i32
    %2 = arith.cmpi ne, %1, %c0_i32_0 : i32
    scf.if %2 {
      %cst = arith.constant 0.000000e+00 : f32
      %12 = vector.broadcast %cst : f32 to vector<128x128xf32>
      %c0 = arith.constant 0 : index
      %c0_4 = arith.constant 0 : index
      %13 = vector.load %arg9[%c0, %c0_4] : memref<128x128xf32, #tpu.memory_space<vmem>>, vector<128x128xf32>
      tpu.vector_store %arg9[%c0, %c0_4], %12 {strides = array<i32>} : memref<128x128xf32, #tpu.memory_space<vmem>>, vector<128x128xf32>,
    } else {
    }
    %3 = arith.index_cast %arg0 : i32 to index
    %4 = arith.index_cast %arg1 : i32 to index
    %5 = memref.load %arg2[%3, %4] : memref<4x4xi32, #tpu.memory_space<smem>>
    %c0_i32_1 = arith.constant 0 : i32
    %6 = arith.cmpi ne, %5, %c0_i32_1 : i32
    %7 = arith.extui %6 : i1 to i32
    %c0_i32_2 = arith.constant 0 : i32
    %8 = arith.cmpi ne, %7, %c0_i32_2 : i32
    scf.if %8 {
      %c0 = arith.constant 0 : index
      %c0_4 = arith.constant 0 : index
      %12 = vector.load %arg9[%c0, %c0_4] : memref<128x128xf32, #tpu.memory_space<vmem>>, vector<128x128xf32>
      %c0_5 = arith.constant 0 : index
      %c0_6 = arith.constant 0 : index
      %13 = vector.load %arg5[%c0_5, %c0_6] : memref<128x128xbf16, #tpu.memory_space<vmem>>, vector<128x128xbf16>
      %c0_7 = arith.constant 0 : index
      %c0_8 = arith.constant 0 : index
      %14 = vector.load %arg6[%c0_7, %c0_8] : memref<128x128xbf16, #tpu.memory_space<vmem>>, vector<128x128xbf16>
      %cst = arith.constant dense<0.000000e+00> : vector<128x128xf32>
      %15 = tpu.matmul %13, %14, %cst {dimension_numbers = #tpu.dot_dimension_numbers<[1], [0], [0], [1], [0, 0, 1, 1], [], []>} : vector<128x128xbf16>, vector<128x128xbf16>, vector<128x128xf32> -> vector<128x128xf32>
      %16 = arith.addf %12, %15 : vector<128x128xf32>
      %c0_9 = arith.constant 0 : index
      %c0_10 = arith.constant 0 : index
      %17 = vector.load %arg9[%c0_9, %c0_10] : memref<128x128xf32, #tpu.memory_space<vmem>>, vector<128x128xf32>
      tpu.vector_store %arg9[%c0_9, %c0_10], %16 {strides = array<i32>} : memref<128x128xf32, #tpu.memory_space<vmem>>, vector<128x128xf32>,
    } else {
    }
    %c3_i32 = arith.constant 3 : i32
    %9 = arith.cmpi eq, %arg1, %c3_i32 : i32
    %10 = arith.extui %9 : i1 to i32
    %c0_i32_3 = arith.constant 0 : i32
    %11 = arith.cmpi ne, %10, %c0_i32_3 : i32
    scf.if %11 {
      %c0 = arith.constant 0 : index
      %c0_4 = arith.constant 0 : index
      %12 = vector.load %arg9[%c0, %c0_4] : memref<128x128xf32, #tpu.memory_space<vmem>>, vector<128x128xf32>
      %c0_5 = arith.constant 0 : index
      %c0_6 = arith.constant 0 : index
      %13 = vector.load %arg7[%c0_5, %c0_6] : memref<128x128xf32, #tpu.memory_space<vmem>>, vector<128x128xf32>
      %14 = arith.addf %12, %13 : vector<128x128xf32>
      %cst = arith.constant 0.000000e+00 : f32
      %15 = vector.broadcast %cst : f32 to vector<128x128xf32>
      %16 = arith.maximumf %14, %15 : vector<128x128xf32>
      %c0_7 = arith.constant 0 : index
      %c0_8 = arith.constant 0 : index
      %17 = vector.load %arg8[%c0_7, %c0_8] : memref<128x128xf32, #tpu.memory_space<vmem>>, vector<128x128xf32>
      tpu.vector_store %arg8[%c0_7, %c0_8], %16 {strides = array<i32>} : memref<128x128xf32, #tpu.memory_space<vmem>>, vector<128x128xf32>,
    } else {
    }
    return
  }
  func.func @transform_0(%arg0: i32, %arg1: i32, %arg2: memref<4x4xi32, #tpu.memory_space<smem>>, %arg3: memref<4x4xi32, #tpu.memory_space<smem>>, %arg4: memref<4x4xi32, #tpu.memory_space<smem>>) -> (i32, i32) {
    %0 = arith.index_cast %arg0 : i32 to index
    %1 = arith.index_cast %arg1 : i32 to index
    %2 = memref.load %arg3[%0, %1] : memref<4x4xi32, #tpu.memory_space<smem>>
    %3 = arith.index_cast %arg0 : i32 to index
    %4 = arith.index_cast %arg1 : i32 to index
    %5 = memref.load %arg4[%3, %4] : memref<4x4xi32, #tpu.memory_space<smem>>
    %c0_i32 = arith.constant 0 : i32
    return %2, %5 : i32, i32
  }
  func.func @transform_1(%arg0: i32, %arg1: i32, %arg2: memref<4x4xi32, #tpu.memory_space<smem>>, %arg3: memref<4x4xi32, #tpu.memory_space<smem>>, %arg4: memref<4x4xi32, #tpu.memory_space<smem>>) -> (i32, i32) {
    %0 = arith.index_cast %arg0 : i32 to index
    %1 = arith.index_cast %arg1 : i32 to index
    %2 = memref.load %arg4[%0, %1] : memref<4x4xi32, #tpu.memory_space<smem>>
    %c0_i32 = arith.constant 0 : i32
    %c0_i32_0 = arith.constant 0 : i32
    return %2, %c0_i32 : i32, i32
  }
  func.func @transform_2(%arg0: i32, %arg1: i32, %arg2: memref<4x4xi32, #tpu.memory_space<smem>>, %arg3: memref<4x4xi32, #tpu.memory_space<smem>>, %arg4: memref<4x4xi32, #tpu.memory_space<smem>>) -> (i32, i32) {
    %c0_i32 = arith.constant 0 : i32
    %c0_i32_0 = arith.constant 0 : i32
    return %arg0, %c0_i32 : i32, i32
  }
  func.func @transform_3(%arg0: i32, %arg1: i32, %arg2: memref<4x4xi32, #tpu.memory_space<smem>>, %arg3: memref<4x4xi32, #tpu.memory_space<smem>>, %arg4: memref<4x4xi32, #tpu.memory_space<smem>>) -> (i32, i32) {
    %c0_i32 = arith.constant 0 : i32
    %c0_i32_0 = arith.constant 0 : i32
    return %arg0, %c0_i32 : i32, i32
  }
}

</mosaic_0001>

<llo_original>
// kernel: tpu_custom_call.1
$region0: #{tpu_custom_call.1}
  #allocation0 [shape = 'u32[]', space=smem, size = 0x4, offset = 0x4, fixed_abs, tag = 'smem constant byte address 0x4 - core index']
  #allocation1 [shape = 'u32[144,128]{1,0:T(1,128)}', space=vmem, size = 0x12000, scoped, tag = 'internal scratch']
  #allocation2 [shape = 'f32[128,128]{1,0:T(8,128)}', space=vmem, size = 0x10000, scoped, tag = 'scratch operand']
  #allocation3 [shape = 's32[1]{0}', space=sflag, size = 0x4, scoped, tag = 'scoped memory for tpu_custom_call.1']
  #allocation4 [shape = 'u8[2048]{0}', space=smem, size = 0x800, scoped, tag = 'prefetched SMEM operand 0']
  #allocation5 [shape = 'u8[2048]{0}', space=smem, size = 0x800, scoped, tag = 'prefetched SMEM operand 1']
  #allocation6 [shape = 'u8[2048]{0}', space=smem, size = 0x800, scoped, tag = 'prefetched SMEM operand 2']
  %s0 = inlined_call_operand.hbm [shape: s32[4,4], index: 0, kind: input, shape index: {}]
  %s1 = inlined_call_operand.hbm [shape: s32[4,4], index: 1, kind: input, shape index: {}]
  %s2 = inlined_call_operand.vmem [shape: s32[4,4], index: 2, kind: input, shape index: {}]
  %s3 = inlined_call_operand.hbm [shape: bf16[512,512], index: 3, kind: input, shape index: {}]
  %s4 = inlined_call_operand.hbm [shape: bf16[512,128], index: 4, kind: input, shape index: {}]
  %s5 = inlined_call_operand.hbm [shape: f32[512,128], index: 5, kind: input, shape index: {}]
  %s6 = inlined_call_operand.hbm [shape: f32[512,128], index: 6, kind: output, shape index: {}]
  %s7 = sld [smem:[#allocation0]]
  $region69: #{tpu_custom_call.1} parent=0
    _
  %s9 = ssub.s32 1, %s7
  %s10 = scalar_select 0, %s9, %s7
  %12 = dma.hbm_to_smem %s0, 64, [#allocation4], [#allocation3]
  %14 = dma.hbm_to_smem %s1, 64, [#allocation5], [#allocation3]
  %s15 = sshll.u32 %s2, 4
  %s16 = int_to_ptr.vmem [resolvable:$true] %s15
  %18 = dma.vmem_to_smem %s16, 64, [#allocation6], [#allocation3]
  %19 = dma.done [#allocation3], 192
  %20 = sfence
  $region1: #{tpu_custom_call.1} parent=0
    #allocation7 [shape = 'u8[65536]{0}', space=vmem, size = 0x10000, scoped, tag = 'input window, operand 3']
    #allocation8 [shape = 's32[2]{0}', space=sflag, size = 0x8, scoped, tag = 'scoped memory for tpu_custom_call.1']
    #allocation9 [shape = 's32[2]{0}', space=sflag, size = 0x8, scoped, tag = 'scoped memory for tpu_custom_call.1']
    #allocation10 [shape = 'u8[65536]{0}', space=vmem, size = 0x10000, scoped, tag = 'input window, operand 4']
    #allocation11 [shape = 's32[2]{0}', space=sflag, size = 0x8, scoped, tag = 'scoped memory for tpu_custom_call.1']
    #allocation12 [shape = 'u8[131072]{0}', space=vmem, size = 0x20000, scoped, tag = 'input window, operand 5']
    #allocation13 [shape = 'u8[131072]{0}', space=vmem, size = 0x20000, scoped, tag = 'output window, operand 0']
    %21 = vsyncpa [#allocation8], 0
    %s22 = scalar_lea.sflag [#allocation8], 1
    %23 = vsyncpa %s22, 0
    %24 = vsyncpa [#allocation11], 0
    %s25 = scalar_lea.sflag [#allocation11], 1
    %26 = vsyncpa %s25, 0
    %27 = vsyncpa [#allocation9], 0
    %s28 = scalar_lea.sflag [#allocation9], 1
    %29 = vsyncpa %s28, 0
    loop: start=0, step=1, limit=18
    $region2: #{tpu_custom_call.1} parent=1 // loop_pre_header
      _
    $region3: #{tpu_custom_call.1} parent=1 // loop_header
      %s31 = sphi 0, %s35
      %p32 = scmp.ge.s32.totalorder %s31, 18
      %s38 = sphi 0, %s50
      %s39 = sphi 0, %s46
      %s40 = sphi 0, %s38
      %s41 = sphi 0, %s39
      %s42 = sphi 0, %s40
      %s43 = sphi 0, %s41
      %s73 = sphi 0, %s75
      %s76 = sphi 0, %s73
      %s77 = sphi 0, %s76
      %s93 = sphi 0, %s77
      %s115 = sphi 0, %s117
      %s118 = sphi 0, %s115
      %s119 = sphi 0, %s118
      %s135 = sphi 0, %s119
      %s141 = sphi 0, %s143
      %s144 = sphi 0, %s141
      %s145 = sphi 0, %s144
      %s161 = sphi 0, %s145
      %s167 = sphi 0, %s169
      %s170 = sphi 0, %s167
      %s171 = sphi 0, %s170
      %s187 = sphi 0, %s171
    $region4: #{tpu_custom_call.1} parent=1 // loop_header_branch
      %34 = sbr.rel (%p32) target = $region8
    $region5: #{tpu_custom_call.1} parent=1 // loop_body
      %s36 = ssub.s32 %s31, 1
      %s37 = ssub.s32 %s31, 2
      %s44 = sadd.s32 1, %s39
      %p45 = scmp.ge.s32.totalorder %s44, 4
      %s46 = scalar_select %p45, 0, %s44
      %s47 = sadd.s32 1, %s38
      %s48 = scalar_select %p45, %s47, %s38
      %p49 = scmp.ge.s32.totalorder %s48, 4
      %s50 = scalar_select %p49, 0, %s48
      %s51 = sshra.s32 %s39, 7
      %s52 = sand.u32 %s39, 127
      %s53 = sadd.s32 %s51, %s38
      %s54 = smul.u32 %s53, 128
      %s55 = sshra.s32 %s39, 7
      %s56 = sand.u32 %s39, 127
      %s57 = sadd.s32 %s54, %s56
      %s58 = sld [smem:[#allocation5 + %s57]]
      %s59 = sld [smem:[#allocation6 + %s57]]
      %s60 = sshra.s32 %s46, 7
      %s61 = sand.u32 %s46, 127
      %s62 = sadd.s32 %s60, %s50
      %s63 = smul.u32 %s62, 128
      %s64 = sshra.s32 %s46, 7
      %s65 = sand.u32 %s46, 127
      %s66 = sadd.s32 %s63, %s65
      %s67 = sld [smem:[#allocation5 + %s66]]
      %s68 = sld [smem:[#allocation6 + %s66]]
      %s69 = ssub.s32 %s58, %s67
      %s70 = ssub.s32 %s59, %s68
      %s71 = sor.u32 %s69, %s70
      %p72 = scmp.eq.s32.totalorder %s71, 0
      %s74 = sadd.s32 %s73, 1
      %s75 = scalar_select %p72, %s73, %s74
      %p78 = pneg %p72
      %p79 = scmp.eq.s32.totalorder %s31, 15
      %p80 = por %p78, %p79
      %p81 = scmp.ne.s32.totalorder %s73, %s76
      %p82 = scmp.eq.s32.totalorder %s31, 0
      %p83 = por %p81, %p82
      %p84 = scmp.ne.s32.totalorder %s73, %s76
      %p85 = scmp.eq.s32.totalorder %s36, 15
      %p86 = por %p84, %p85
      %p87 = scmp.ne.s32.totalorder %s76, %s77
      %p88 = scmp.eq.s32.totalorder %s36, 0
      %p89 = por %p87, %p88
      %p90 = scmp.ne.s32.totalorder %s76, %s77
      %p91 = scmp.eq.s32.totalorder %s37, 15
      %p92 = por %p90, %p91
      %p94 = scmp.ne.s32.totalorder %s77, %s93
      %p95 = scmp.eq.s32.totalorder %s37, 0
      %p96 = por %p94, %p95
      %s97 = sshra.s32 %s39, 7
      %s98 = sand.u32 %s39, 127
      %s99 = sadd.s32 %s97, %s38
      %s100 = smul.u32 %s99, 128
      %s101 = sshra.s32 %s39, 7
      %s102 = sand.u32 %s39, 127
      %s103 = sadd.s32 %s100, %s102
      %s104 = sld [smem:[#allocation6 + %s103]]
      %s105 = sshra.s32 %s46, 7
      %s106 = sand.u32 %s46, 127
      %s107 = sadd.s32 %s105, %s50
      %s108 = smul.u32 %s107, 128
      %s109 = sshra.s32 %s46, 7
      %s110 = sand.u32 %s46, 127
      %s111 = sadd.s32 %s108, %s110
      %s112 = sld [smem:[#allocation6 + %s111]]
      %s113 = ssub.s32 %s104, %s112
      %p114 = scmp.eq.s32.totalorder %s113, 0
      %s116 = sadd.s32 %s115, 1
      %s117 = scalar_select %p114, %s115, %s116
      %p120 = pneg %p114
      %p121 = scmp.eq.s32.totalorder %s31, 15
      %p122 = por %p120, %p121
      %p123 = scmp.ne.s32.totalorder %s115, %s118
      %p124 = scmp.eq.s32.totalorder %s31, 0
      %p125 = por %p123, %p124
      %p126 = scmp.ne.s32.totalorder %s115, %s118
      %p127 = scmp.eq.s32.totalorder %s36, 15
      %p128 = por %p126, %p127
      %p129 = scmp.ne.s32.totalorder %s118, %s119
      %p130 = scmp.eq.s32.totalorder %s36, 0
      %p131 = por %p129, %p130
      %p132 = scmp.ne.s32.totalorder %s118, %s119
      %p133 = scmp.eq.s32.totalorder %s37, 15
      %p134 = por %p132, %p133
      %p136 = scmp.ne.s32.totalorder %s119, %s135
      %p137 = scmp.eq.s32.totalorder %s37, 0
      %p138 = por %p136, %p137
      %s139 = ssub.s32 %s38, %s50
      %p140 = scmp.eq.s32.totalorder %s139, 0
      %s142 = sadd.s32 %s141, 1
      %s143 = scalar_select %p140, %s141, %s142
      %p146 = pneg %p140
      %p147 = scmp.eq.s32.totalorder %s31, 15
      %p148 = por %p146, %p147
      %p149 = scmp.ne.s32.totalorder %s141, %s144
      %p150 = scmp.eq.s32.totalorder %s31, 0
      %p151 = por %p149, %p150
      %p152 = scmp.ne.s32.totalorder %s141, %s144
      %p153 = scmp.eq.s32.totalorder %s36, 15
      %p154 = por %p152, %p153
      %p155 = scmp.ne.s32.totalorder %s144, %s145
      %p156 = scmp.eq.s32.totalorder %s36, 0
      %p157 = por %p155, %p156
      %p158 = scmp.ne.s32.totalorder %s144, %s145
      %p159 = scmp.eq.s32.totalorder %s37, 15
      %p160 = por %p158, %p159
      %p162 = scmp.ne.s32.totalorder %s145, %s161
      %p163 = scmp.eq.s32.totalorder %s37, 0
      %p164 = por %p162, %p163
      %s165 = ssub.s32 %s38, %s50
      %p166 = scmp.eq.s32.totalorder %s165, 0
      %s168 = sadd.s32 %s167, 1
      %s169 = scalar_select %p166, %s167, %s168
      %p172 = pneg %p166
      %p173 = scmp.eq.s32.totalorder %s31, 15
      %p174 = por %p172, %p173
      %p175 = scmp.ne.s32.totalorder %s167, %s170
      %p176 = scmp.eq.s32.totalorder %s31, 0
      %p177 = por %p175, %p176
      %p178 = scmp.ne.s32.totalorder %s167, %s170
      %p179 = scmp.eq.s32.totalorder %s36, 15
      %p180 = por %p178, %p179
      %p181 = scmp.ne.s32.totalorder %s170, %s171
      %p182 = scmp.eq.s32.totalorder %s36, 0
      %p183 = por %p181, %p182
      %p184 = scmp.ne.s32.totalorder %s170, %s171
      %p185 = scmp.eq.s32.totalorder %s37, 15
      %p186 = por %p184, %p185
      %p188 = scmp.ne.s32.totalorder %s171, %s187
      %p189 = scmp.eq.s32.totalorder %s37, 0
      %p190 = por %p188, %p189
      %p191 = scmp.le.s32.totalorder 1, %s31
      %p192 = scmp.lt.s32.totalorder %s31, 17
      %p193 = pnand %p191, %p192
      %p194 = pneg %p193
      // Predicated region
      $region9: #{tpu_custom_call.1} parent=5 // pred_check
        _
      $region10: #{tpu_custom_call.1} parent=5 // pred_check_branch
        %196 = sbr.rel (%p193) target = $region12
      $region11: #{tpu_custom_call.1} parent=5 // pred_region
        %s197 = ssub.s32 %s31, 1
      $region12: #{tpu_custom_call.1} parent=5 // pred_fallthru
        _
      %p198 = scmp.lt.s32.totalorder %s31, 16
      // Predicated region
      $region13: #{tpu_custom_call.1} parent=5 // pred_check
        %p199 = pneg %p198
      $region14: #{tpu_custom_call.1} parent=5 // pred_check_branch
        %201 = sbr.rel (%p199) target = $region16
      $region15: #{tpu_custom_call.1} parent=5 // pred_region
        // Predicated region
        $region17: #{tpu_custom_call.1} parent=15 // pred_check
          %p202 = pneg %p83
        $region18: #{tpu_custom_call.1} parent=15 // pred_check_branch
          %204 = sbr.rel (%p202) target = $region20
        $region19: #{tpu_custom_call.1} parent=15 // pred_region
          %s205 = sand.u32 %s73, 1
          %s206 = scalar_lea.sflag [#allocation8], %s205
          %s207 = sand.u32 %s73, 1
          %s208 = smul.addr %s207, 64
          %s209 = scalar_lea.vmem [#allocation7], %s208
          %s210 = sshra.s32 %s39, 7
          %s211 = sand.u32 %s39, 127
          %s212 = sadd.s32 %s210, %s38
          %s213 = smul.u32 %s212, 128
          %s214 = sshra.s32 %s39, 7
          %s215 = sand.u32 %s39, 127
          %s216 = sadd.s32 %s213, %s215
          %s217 = sld [smem:[#allocation5 + %s216]]
          %s218 = sld [smem:[#allocation6 + %s216]]
          %s219 = smul.u32 16, %s217
          %s221 = ssub.s32 1024, 1024
          %222 = vsyncadd %s206, %s221
          %s223 = smul.addr %s219, 4
          %s224 = sadd.s32 %s218, %s223
          %s225 = smul.addr %s224, 64
          %s226 = scalar_lea.hbm %s3, %s225
          %s227 = sshll.u32 %s209, 4
          %s228 = int_to_ptr.vmem [resolvable:$true] %s227
          %233 = dma.hbm_to_vmem [thread:$0]  %s226, 1024, %s228, %s206, 256, 64, 4
        $region20: #{tpu_custom_call.1} parent=15 // pred_fallthru
          _
        // Predicated region
        $region21: #{tpu_custom_call.1} parent=15 // pred_check
          %p234 = pneg %p125
        $region22: #{tpu_custom_call.1} parent=15 // pred_check_branch
          %236 = sbr.rel (%p234) target = $region24
        $region23: #{tpu_custom_call.1} parent=15 // pred_region
          %s237 = sand.u32 %s31, 1
          %s238 = scalar_lea.sflag [#allocation11], %s237
          %s239 = sand.u32 %s115, 1
          %s240 = smul.addr %s239, 64
          %s241 = scalar_lea.vmem [#allocation10], %s240
          %s242 = sshra.s32 %s39, 7
          %s243 = sand.u32 %s39, 127
          %s244 = sadd.s32 %s242, %s38
          %s245 = smul.u32 %s244, 128
          %s246 = sshra.s32 %s39, 7
          %s247 = sand.u32 %s39, 127
          %s248 = sadd.s32 %s245, %s247
          %s249 = sld [smem:[#allocation6 + %s248]]
          %s250 = smul.u32 16, %s249
          %s252 = ssub.s32 1024, 1024
          %253 = vsyncadd %s238, %s252
          %s254 = smul.addr %s250, 64
          %s255 = scalar_lea.hbm %s4, %s254
          %s256 = sshll.u32 %s241, 4
          %s257 = int_to_ptr.vmem [resolvable:$true] %s256
          %262 = dma.hbm_to_vmem [thread:$0]  %s255, 1024, %s257, %s238, 64, 64, 4
        $region24: #{tpu_custom_call.1} parent=15 // pred_fallthru
          _
        // Predicated region
        $region25: #{tpu_custom_call.1} parent=15 // pred_check
          %p263 = pneg %p151
        $region26: #{tpu_custom_call.1} parent=15 // pred_check_branch
          %265 = sbr.rel (%p263) target = $region28
        $region27: #{tpu_custom_call.1} parent=15 // pred_region
          %s266 = sand.u32 %s31, 1
          %s267 = scalar_lea.sflag [#allocation11], %s266
          %s268 = sand.u32 %s141, 1
          %s269 = smul.addr %s268, 128
          %s270 = scalar_lea.vmem [#allocation12], %s269
          %s271 = smul.u32 16, %s38
          %s273 = ssub.s32 2048, 2048
          %274 = vsyncadd %s267, %s273
          %s275 = smul.addr %s271, 128
          %s276 = scalar_lea.hbm %s5, %s275
          %s277 = sshll.u32 %s270, 4
          %s278 = int_to_ptr.vmem [resolvable:$true] %s277
          %283 = dma.hbm_to_vmem [thread:$0]  %s276, 2048, %s278, %s267, 128, 128, 8
        $region28: #{tpu_custom_call.1} parent=15 // pred_fallthru
          _
      $region16: #{tpu_custom_call.1} parent=5 // pred_fallthru
        _
      %p284 = scmp.le.s32.totalorder 1, %s31
      %p285 = scmp.lt.s32.totalorder %s31, 17
      %p286 = pnand %p284, %p285
      %p287 = pneg %p286
      // Predicated region
      $region29: #{tpu_custom_call.1} parent=5 // pred_check
        _
      $region30: #{tpu_custom_call.1} parent=5 // pred_check_branch
        %289 = sbr.rel (%p286) target = $region32
      $region31: #{tpu_custom_call.1} parent=5 // pred_region
        %s290 = ssub.s32 %s31, 1
        %s291 = sand.u32 %s76, 1
        %s292 = scalar_lea.sflag [#allocation8], %s291
        %s293 = sand.u32 %s76, 1
        %s294 = smul.addr %s293, 64
        %s295 = scalar_lea.vmem [#allocation7], %s294
        // Predicated region
        $region33: #{tpu_custom_call.1} parent=31 // pred_check
          %p296 = pneg %p89
        $region34: #{tpu_custom_call.1} parent=31 // pred_check_branch
          %298 = sbr.rel (%p296) target = $region36
        $region35: #{tpu_custom_call.1} parent=31 // pred_region
          %299 = dma.done %s292, 1024
        $region36: #{tpu_custom_call.1} parent=31 // pred_fallthru
          _
        %s300 = sand.u32 %s36, 1
        %s301 = scalar_lea.sflag [#allocation11], %s300
        %s302 = sand.u32 %s118, 1
        %s303 = smul.addr %s302, 64
        %s304 = scalar_lea.vmem [#allocation10], %s303
        // Predicated region
        $region37: #{tpu_custom_call.1} parent=31 // pred_check
          %p305 = pneg %p131
        $region38: #{tpu_custom_call.1} parent=31 // pred_check_branch
          %307 = sbr.rel (%p305) target = $region40
        $region39: #{tpu_custom_call.1} parent=31 // pred_region
          %308 = dma.done %s301, 1024
        $region40: #{tpu_custom_call.1} parent=31 // pred_fallthru
          _
        %s309 = sand.u32 %s36, 1
        %s310 = scalar_lea.sflag [#allocation11], %s309
        %s311 = sand.u32 %s144, 1
        %s312 = smul.addr %s311, 128
        %s313 = scalar_lea.vmem [#allocation12], %s312
        // Predicated region
        $region41: #{tpu_custom_call.1} parent=31 // pred_check
          %p314 = pneg %p157
        $region42: #{tpu_custom_call.1} parent=31 // pred_check_branch
          %316 = sbr.rel (%p314) target = $region44
        $region43: #{tpu_custom_call.1} parent=31 // pred_region
          %317 = dma.done %s310, 2048
        $region44: #{tpu_custom_call.1} parent=31 // pred_fallthru
          _
        %s318 = sand.u32 %s76, 1
        %s319 = scalar_lea.sflag [#allocation8], %s318
        %s320 = sand.u32 %s76, 1
        %s321 = smul.addr %s320, 64
        %s322 = scalar_lea.vmem [#allocation7], %s321
        %p323 = pneg %p89
        %p324 = pneg %p86
        %s325 = sand.u32 %s36, 1
        %s326 = scalar_lea.sflag [#allocation11], %s325
        %s327 = sand.u32 %s118, 1
        %s328 = smul.addr %s327, 64
        %s329 = scalar_lea.vmem [#allocation10], %s328
        %p330 = pneg %p131
        %p331 = pneg %p128
        %s332 = sand.u32 %s36, 1
        %s333 = scalar_lea.sflag [#allocation11], %s332
        %s334 = sand.u32 %s144, 1
        %s335 = smul.addr %s334, 128
        %s336 = scalar_lea.vmem [#allocation12], %s335
        %p337 = pneg %p157
        %p338 = pneg %p154
        %p339 = pneg %p183
        %p340 = pneg %p180
        %s341 = sand.u32 %s170, 1
        %s342 = scalar_lea.sflag [#allocation9], %s341
        %s343 = sand.u32 %s170, 1
        %s344 = smul.addr %s343, 128
        %s345 = scalar_lea.vmem [#allocation13], %s344
        %s346 = sshra.s32 %s41, 7
        %s347 = sand.u32 %s41, 127
        %s348 = sadd.s32 %s346, %s40
        %s349 = smul.u32 %s348, 128
        %s350 = sshra.s32 %s41, 7
        %s351 = sand.u32 %s41, 127
        %s352 = sadd.s32 %s349, %s351
        %s353 = sld [smem:[#allocation5 + %s352]]
        %s354 = sld [smem:[#allocation6 + %s352]]
        %s355 = smul.u32 16, %s353
        %s356 = sshra.s32 %s41, 7
        %s357 = sand.u32 %s41, 127
        %s358 = sadd.s32 %s356, %s40
        %s359 = smul.u32 %s358, 128
        %s360 = sshra.s32 %s41, 7
        %s361 = sand.u32 %s41, 127
        %s362 = sadd.s32 %s359, %s361
        %s363 = sld [smem:[#allocation6 + %s362]]
        %s364 = smul.u32 16, %s363
        %s365 = smul.u32 16, %s40
        %s366 = smul.u32 16, %s40
        %p368 = scmp.eq.s32.totalorder %s41, 0
        // Predicated region
        $region45: #{tpu_custom_call.1} parent=31 // pred_check
          %p369 = pneg %p368
        $region46: #{tpu_custom_call.1} parent=31 // pred_check_branch
          %371 = sbr.rel (%p369) target = $region48
        $region47: #{tpu_custom_call.1} parent=31 // pred_region
          %372 = vst [vmem:[#allocation2] sm:$0xff] 0.0
          %373 = vst [vmem:[#allocation2 + $0x8] sm:$0xff] 0.0
          %374 = vst [vmem:[#allocation2 + $0x10] sm:$0xff] 0.0
          %375 = vst [vmem:[#allocation2 + $0x18] sm:$0xff] 0.0
          %376 = vst [vmem:[#allocation2 + $0x20] sm:$0xff] 0.0
          %377 = vst [vmem:[#allocation2 + $0x28] sm:$0xff] 0.0
          %378 = vst [vmem:[#allocation2 + $0x30] sm:$0xff] 0.0
          %379 = vst [vmem:[#allocation2 + $0x38] sm:$0xff] 0.0
          %380 = vst [vmem:[#allocation2 + $0x40] sm:$0xff] 0.0
          %381 = vst [vmem:[#allocation2 + $0x48] sm:$0xff] 0.0
          %382 = vst [vmem:[#allocation2 + $0x50] sm:$0xff] 0.0
          %383 = vst [vmem:[#allocation2 + $0x58] sm:$0xff] 0.0
          %384 = vst [vmem:[#allocation2 + $0x60] sm:$0xff] 0.0
          %385 = vst [vmem:[#allocation2 + $0x68] sm:$0xff] 0.0
          %386 = vst [vmem:[#allocation2 + $0x70] sm:$0xff] 0.0
          %387 = vst [vmem:[#allocation2 + $0x78] sm:$0xff] 0.0
        $region48: #{tpu_custom_call.1} parent=31 // pred_fallthru
          _
        %s388 = sshra.s32 %s41, 7
        %s389 = sand.u32 %s41, 127
        %s390 = sadd.s32 %s388, %s40
        %s391 = smul.u32 %s390, 128
        %s392 = sshra.s32 %s41, 7
        %s393 = sand.u32 %s41, 127
        %s394 = sadd.s32 %s391, %s393
        %s395 = sld [smem:[#allocation4 + %s394]]
        %p396 = scmp.ne.s32.totalorder %s395, 0
        // Predicated region
        $region49: #{tpu_custom_call.1} parent=31 // pred_check
          %p397 = pneg %p396
        $region50: #{tpu_custom_call.1} parent=31 // pred_check_branch
          %399 = sbr.rel (%p397) target = $region52
        $region51: #{tpu_custom_call.1} parent=31 // pred_region
          %v400 = vld [vmem:[#allocation2] sm:$0xff]
          %v401 = vld [vmem:[#allocation2 + $0x8] sm:$0xff]
          %v402 = vld [vmem:[#allocation2 + $0x10] sm:$0xff]
          %v403 = vld [vmem:[#allocation2 + $0x18] sm:$0xff]
          %v404 = vld [vmem:[#allocation2 + $0x20] sm:$0xff]
          %v405 = vld [vmem:[#allocation2 + $0x28] sm:$0xff]
          %v406 = vld [vmem:[#allocation2 + $0x30] sm:$0xff]
          %v407 = vld [vmem:[#allocation2 + $0x38] sm:$0xff]
          %v408 = vld [vmem:[#allocation2 + $0x40] sm:$0xff]
          %v409 = vld [vmem:[#allocation2 + $0x48] sm:$0xff]
          %v410 = vld [vmem:[#allocation2 + $0x50] sm:$0xff]
          %v411 = vld [vmem:[#allocation2 + $0x58] sm:$0xff]
          %v412 = vld [vmem:[#allocation2 + $0x60] sm:$0xff]
          %v413 = vld [vmem:[#allocation2 + $0x68] sm:$0xff]
          %v414 = vld [vmem:[#allocation2 + $0x70] sm:$0xff]
          %v415 = vld [vmem:[#allocation2 + $0x78] sm:$0xff]
          %v416 = vld [vmem:[%s295] sm:$0xf]
          %v417 = vld [vmem:[%s295 + $0x4] sm:$0xf]
          %v418 = vld [vmem:[%s295 + $0x8] sm:$0xf]
          %v419 = vld [vmem:[%s295 + $0xc] sm:$0xf]
          %v420 = vld [vmem:[%s295 + $0x10] sm:$0xf]
          %v421 = vld [vmem:[%s295 + $0x14] sm:$0xf]
          %v422 = vld [vmem:[%s295 + $0x18] sm:$0xf]
          %v423 = vld [vmem:[%s295 + $0x1c] sm:$0xf]
          %v424 = vld [vmem:[%s295 + $0x20] sm:$0xf]
          %v425 = vld [vmem:[%s295 + $0x24] sm:$0xf]
          %v426 = vld [vmem:[%s295 + $0x28] sm:$0xf]
          %v427 = vld [vmem:[%s295 + $0x2c] sm:$0xf]
          %v428 = vld [vmem:[%s295 + $0x30] sm:$0xf]
          %v429 = vld [vmem:[%s295 + $0x34] sm:$0xf]
          %v430 = vld [vmem:[%s295 + $0x38] sm:$0xf]
          %v431 = vld [vmem:[%s295 + $0x3c] sm:$0xf]
          %v432 = vld [vmem:[%s304] sm:$0xf]
          %v433 = vld [vmem:[%s304 + $0x4] sm:$0xf]
          %v434 = vld [vmem:[%s304 + $0x8] sm:$0xf]
          %v435 = vld [vmem:[%s304 + $0xc] sm:$0xf]
          %v436 = vld [vmem:[%s304 + $0x10] sm:$0xf]
          %v437 = vld [vmem:[%s304 + $0x14] sm:$0xf]
          %v438 = vld [vmem:[%s304 + $0x18] sm:$0xf]
          %v439 = vld [vmem:[%s304 + $0x1c] sm:$0xf]
          %v440 = vld [vmem:[%s304 + $0x20] sm:$0xf]
          %v441 = vld [vmem:[%s304 + $0x24] sm:$0xf]
          %v442 = vld [vmem:[%s304 + $0x28] sm:$0xf]
          %v443 = vld [vmem:[%s304 + $0x2c] sm:$0xf]
          %v444 = vld [vmem:[%s304 + $0x30] sm:$0xf]
          %v445 = vld [vmem:[%s304 + $0x34] sm:$0xf]
          %v446 = vld [vmem:[%s304 + $0x38] sm:$0xf]
          %v447 = vld [vmem:[%s304 + $0x3c] sm:$0xf]
          %v464 = vunpack.c.l.b16 %v416
          %v465 = vunpack.c.l.b16 %v417
          %v466 = vunpack.c.l.b16 %v418
          %v467 = vunpack.c.l.b16 %v419
          %v468 = vunpack.c.l.b16 %v420
          %v469 = vunpack.c.l.b16 %v421
          %v470 = vunpack.c.l.b16 %v422
          %v471 = vunpack.c.l.b16 %v423
          %v472 = vunpack.c.l.b16 %v424
          %v473 = vunpack.c.l.b16 %v425
          %v474 = vunpack.c.l.b16 %v426
          %v475 = vunpack.c.l.b16 %v427
          %v476 = vunpack.c.l.b16 %v428
          %v477 = vunpack.c.l.b16 %v429
          %v478 = vunpack.c.l.b16 %v430
          %v479 = vunpack.c.l.b16 %v431
          %v480 = vpack.c.b16 %v465, %v464
          %v481 = vpack.c.b16 %v467, %v466
          %v482 = vpack.c.b16 %v469, %v468
          %v483 = vpack.c.b16 %v471, %v470
          %v484 = vpack.c.b16 %v473, %v472
          %v485 = vpack.c.b16 %v475, %v474
          %v486 = vpack.c.b16 %v477, %v476
          %v487 = vpack.c.b16 %v479, %v478
          %v512 = vunpack.c.l.b16 %v432
          %v513 = vunpack.c.l.b16 %v433
          %v514 = vunpack.c.l.b16 %v434
          %v515 = vunpack.c.l.b16 %v435
          %v516 = vunpack.c.l.b16 %v436
          %v517 = vunpack.c.l.b16 %v437
          %v518 = vunpack.c.l.b16 %v438
          %v519 = vunpack.c.l.b16 %v439
          %v520 = vunpack.c.l.b16 %v440
          %v521 = vunpack.c.l.b16 %v441
          %v522 = vunpack.c.l.b16 %v442
          %v523 = vunpack.c.l.b16 %v443
          %v524 = vunpack.c.l.b16 %v444
          %v525 = vunpack.c.l.b16 %v445
          %v526 = vunpack.c.l.b16 %v446
          %v527 = vunpack.c.l.b16 %v447
          %v528 = vpack.c.b16 %v513, %v512
          %v529 = vpack.c.b16 %v515, %v514
          %v530 = vpack.c.b16 %v517, %v516
          %v531 = vpack.c.b16 %v519, %v518
          %v532 = vpack.c.b16 %v521, %v520
          %v533 = vpack.c.b16 %v523, %v522
          %v534 = vpack.c.b16 %v525, %v524
          %v535 = vpack.c.b16 %v527, %v526
          %544 = vmatprep.subr.bf16.mxu0 0
          %545 = vmatpush1.bf16.msra.mxu0 %v528
          %546 = vmatprep.subr.bf16.mxu0 0
          %547 = vmatpush1.bf16.msra.mxu0 %v529
          %548 = vmatprep.subr.bf16.mxu0 0
          %549 = vmatpush1.bf16.msra.mxu0 %v530
          %550 = vmatprep.subr.bf16.mxu0 0
          %551 = vmatpush1.bf16.msra.mxu0 %v531
          %552 = vmatprep.subr.bf16.mxu0 0
          %553 = vmatpush1.bf16.msra.mxu0 %v532
          %554 = vmatprep.subr.bf16.mxu0 0
          %555 = vmatpush1.bf16.msra.mxu0 %v533
          %556 = vmatprep.subr.bf16.mxu0 0
          %557 = vmatpush1.bf16.msra.mxu0 %v534
          %558 = vmatprep.subr.bf16.mxu0 0
          %559 = vmatpush1.bf16.msra.mxu0 %v535
          %560 = vmatprep.subr.bf16.mxu0 0
          %561 = vmatpush1.bf16.msra.mxu0 0
          %562 = vmatprep.subr.bf16.mxu0 0
          %563 = vmatpush1.bf16.msra.mxu0 0
          %564 = vmatprep.subr.bf16.mxu0 0
          %565 = vmatpush1.bf16.msra.mxu0 0
          %566 = vmatprep.subr.bf16.mxu0 0
          %567 = vmatpush1.bf16.msra.mxu0 0
          %568 = vmatprep.subr.bf16.mxu0 0
          %569 = vmatpush1.bf16.msra.mxu0 0
          %570 = vmatprep.subr.bf16.mxu0 0
          %571 = vmatpush1.bf16.msra.mxu0 0
          %572 = vmatprep.subr.bf16.mxu0 0
          %573 = vmatpush1.bf16.msra.mxu0 0
          %574 = vmatprep.subr.bf16.mxu0 0
          %575 = vmatpush1.bf16.msra.mxu0 0
          %576 = vmatprep.mubr.bf16.mxu0 0
          %577 = vmatmul.mubr.bf16.gmra.mrb[0].mxu0 %v480
          %v578 = vpop.f32.mrb[0].mxu0
          %v579 = vadd.f32 0.0, %v578
          %v580 = vpop.f32.mrb[0].mxu0
          %v581 = vpop.f32.mrb[0].mxu0
          %v582 = vadd.f32 0.0, %v581
          %v583 = vpop.f32.mrb[0].mxu0
          %584 = vmatprep.mubr.bf16.mxu0 0
          %585 = vmatmul.mubr.bf16.gmra.mrb[0].mxu0 %v481
          %v586 = vpop.f32.mrb[0].mxu0
          %v587 = vadd.f32 0.0, %v586
          %v588 = vpop.f32.mrb[0].mxu0
          %v589 = vpop.f32.mrb[0].mxu0
          %v590 = vadd.f32 0.0, %v589
          %v591 = vpop.f32.mrb[0].mxu0
          %592 = vmatprep.mubr.bf16.mxu0 0
          %593 = vmatmul.mubr.bf16.gmra.mrb[0].mxu0 %v482
          %v594 = vpop.f32.mrb[0].mxu0
          %v595 = vadd.f32 0.0, %v594
          %v596 = vpop.f32.mrb[0].mxu0
          %v597 = vpop.f32.mrb[0].mxu0
          %v598 = vadd.f32 0.0, %v597
          %v599 = vpop.f32.mrb[0].mxu0
          %600 = vmatprep.mubr.bf16.mxu0 0
          %601 = vmatmul.mubr.bf16.gmra.mrb[0].mxu0 %v483
          %v602 = vpop.f32.mrb[0].mxu0
          %v603 = vadd.f32 0.0, %v602
          %v604 = vpop.f32.mrb[0].mxu0
          %v605 = vpop.f32.mrb[0].mxu0
          %v606 = vadd.f32 0.0, %v605
          %v607 = vpop.f32.mrb[0].mxu0
          %608 = vmatprep.mubr.bf16.mxu0 0
          %609 = vmatmul.mubr.bf16.gmra.mrb[0].mxu0 %v484
          %v610 = vpop.f32.mrb[0].mxu0
          %v611 = vadd.f32 0.0, %v610
          %v612 = vpop.f32.mrb[0].mxu0
          %v613 = vpop.f32.mrb[0].mxu0
          %v614 = vadd.f32 0.0, %v613
          %v615 = vpop.f32.mrb[0].mxu0
          %616 = vmatprep.mubr.bf16.mxu0 0
          %617 = vmatmul.mubr.bf16.gmra.mrb[0].mxu0 %v485
          %v618 = vpop.f32.mrb[0].mxu0
          %v619 = vadd.f32 0.0, %v618
          %v620 = vpop.f32.mrb[0].mxu0
          %v621 = vpop.f32.mrb[0].mxu0
          %v622 = vadd.f32 0.0, %v621
          %v623 = vpop.f32.mrb[0].mxu0
          %624 = vmatprep.mubr.bf16.mxu0 0
          %625 = vmatmul.mubr.bf16.gmra.mrb[0].mxu0 %v486
          %v626 = vpop.f32.mrb[0].mxu0
          %v627 = vadd.f32 0.0, %v626
          %v628 = vpop.f32.mrb[0].mxu0
          %v629 = vpop.f32.mrb[0].mxu0
          %v630 = vadd.f32 0.0, %v629
          %v631 = vpop.f32.mrb[0].mxu0
          %632 = vmatprep.mubr.bf16.mxu0 0
          %633 = vmatmul.mubr.bf16.gmra.mrb[0].mxu0 %v487
          %v634 = vpop.f32.mrb[0].mxu0
          %v635 = vadd.f32 0.0, %v634
          %v636 = vpop.f32.mrb[0].mxu0
          %v637 = vpop.f32.mrb[0].mxu0
          %v638 = vadd.f32 0.0, %v637
          %v639 = vpop.f32.mrb[0].mxu0
          %640 = vdwg.mxu0
          %v641 = vadd.f32 %v400, %v579
          %v642 = vadd.f32 %v401, %v582
          %v643 = vadd.f32 %v402, %v587
          %v644 = vadd.f32 %v403, %v590
          %v645 = vadd.f32 %v404, %v595
          %v646 = vadd.f32 %v405, %v598
          %v647 = vadd.f32 %v406, %v603
          %v648 = vadd.f32 %v407, %v606
          %v649 = vadd.f32 %v408, %v611
          %v650 = vadd.f32 %v409, %v614
          %v651 = vadd.f32 %v410, %v619
          %v652 = vadd.f32 %v411, %v622
          %v653 = vadd.f32 %v412, %v627
          %v654 = vadd.f32 %v413, %v630
          %v655 = vadd.f32 %v414, %v635
          %v656 = vadd.f32 %v415, %v638
          %657 = vst [vmem:[#allocation2] sm:$0xff] %v641
          %658 = vst [vmem:[#allocation2 + $0x8] sm:$0xff] %v642
          %659 = vst [vmem:[#allocation2 + $0x10] sm:$0xff] %v643
          %660 = vst [vmem:[#allocation2 + $0x18] sm:$0xff] %v644
          %661 = vst [vmem:[#allocation2 + $0x20] sm:$0xff] %v645
          %662 = vst [vmem:[#allocation2 + $0x28] sm:$0xff] %v646
          %663 = vst [vmem:[#allocation2 + $0x30] sm:$0xff] %v647
          %664 = vst [vmem:[#allocation2 + $0x38] sm:$0xff] %v648
          %665 = vst [vmem:[#allocation2 + $0x40] sm:$0xff] %v649
          %666 = vst [vmem:[#allocation2 + $0x48] sm:$0xff] %v650
          %667 = vst [vmem:[#allocation2 + $0x50] sm:$0xff] %v651
          %668 = vst [vmem:[#allocation2 + $0x58] sm:$0xff] %v652
          %669 = vst [vmem:[#allocation2 + $0x60] sm:$0xff] %v653
          %670 = vst [vmem:[#allocation2 + $0x68] sm:$0xff] %v654
          %671 = vst [vmem:[#allocation2 + $0x70] sm:$0xff] %v655
          %672 = vst [vmem:[#allocation2 + $0x78] sm:$0xff] %v656
        $region52: #{tpu_custom_call.1} parent=31 // pred_fallthru
          _
        %p673 = scmp.eq.s32.totalorder %s41, 3
        // Predicated region
        $region53: #{tpu_custom_call.1} parent=31 // pred_check
          %p674 = pneg %p673
        $region54: #{tpu_custom_call.1} parent=31 // pred_check_branch
          %676 = sbr.rel (%p674) target = $region56
        $region55: #{tpu_custom_call.1} parent=31 // pred_region
          %v677 = vld [vmem:[#allocation2] sm:$0xff]
          %v678 = vld [vmem:[#allocation2 + $0x8] sm:$0xff]
          %v679 = vld [vmem:[#allocation2 + $0x10] sm:$0xff]
          %v680 = vld [vmem:[#allocation2 + $0x18] sm:$0xff]
          %v681 = vld [vmem:[#allocation2 + $0x20] sm:$0xff]
          %v682 = vld [vmem:[#allocation2 + $0x28] sm:$0xff]
          %v683 = vld [vmem:[#allocation2 + $0x30] sm:$0xff]
          %v684 = vld [vmem:[#allocation2 + $0x38] sm:$0xff]
          %v685 = vld [vmem:[#allocation2 + $0x40] sm:$0xff]
          %v686 = vld [vmem:[#allocation2 + $0x48] sm:$0xff]
          %v687 = vld [vmem:[#allocation2 + $0x50] sm:$0xff]
          %v688 = vld [vmem:[#allocation2 + $0x58] sm:$0xff]
          %v689 = vld [vmem:[#allocation2 + $0x60] sm:$0xff]
          %v690 = vld [vmem:[#allocation2 + $0x68] sm:$0xff]
          %v691 = vld [vmem:[#allocation2 + $0x70] sm:$0xff]
          %v692 = vld [vmem:[#allocation2 + $0x78] sm:$0xff]
          %v693 = vld [vmem:[%s313] sm:$0xff]
          %v694 = vld [vmem:[%s313 + $0x8] sm:$0xff]
          %v695 = vld [vmem:[%s313 + $0x10] sm:$0xff]
          %v696 = vld [vmem:[%s313 + $0x18] sm:$0xff]
          %v697 = vld [vmem:[%s313 + $0x20] sm:$0xff]
          %v698 = vld [vmem:[%s313 + $0x28] sm:$0xff]
          %v699 = vld [vmem:[%s313 + $0x30] sm:$0xff]
          %v700 = vld [vmem:[%s313 + $0x38] sm:$0xff]
          %v701 = vld [vmem:[%s313 + $0x40] sm:$0xff]
          %v702 = vld [vmem:[%s313 + $0x48] sm:$0xff]
          %v703 = vld [vmem:[%s313 + $0x50] sm:$0xff]
          %v704 = vld [vmem:[%s313 + $0x58] sm:$0xff]
          %v705 = vld [vmem:[%s313 + $0x60] sm:$0xff]
          %v706 = vld [vmem:[%s313 + $0x68] sm:$0xff]
          %v707 = vld [vmem:[%s313 + $0x70] sm:$0xff]
          %v708 = vld [vmem:[%s313 + $0x78] sm:$0xff]
          %v709 = vadd.f32 %v677, %v693
          %v710 = vadd.f32 %v678, %v694
          %v711 = vadd.f32 %v679, %v695
          %v712 = vadd.f32 %v680, %v696
          %v713 = vadd.f32 %v681, %v697
          %v714 = vadd.f32 %v682, %v698
          %v715 = vadd.f32 %v683, %v699
          %v716 = vadd.f32 %v684, %v700
          %v717 = vadd.f32 %v685, %v701
          %v718 = vadd.f32 %v686, %v702
          %v719 = vadd.f32 %v687, %v703
          %v720 = vadd.f32 %v688, %v704
          %v721 = vadd.f32 %v689, %v705
          %v722 = vadd.f32 %v690, %v706
          %v723 = vadd.f32 %v691, %v707
          %v724 = vadd.f32 %v692, %v708
          %v725 = vmax.f32 %v709, 0.0
          %v726 = vmax.f32 %v710, 0.0
          %v727 = vmax.f32 %v711, 0.0
          %v728 = vmax.f32 %v712, 0.0
          %v729 = vmax.f32 %v713, 0.0
          %v730 = vmax.f32 %v714, 0.0
          %v731 = vmax.f32 %v715, 0.0
          %v732 = vmax.f32 %v716, 0.0
          %v733 = vmax.f32 %v717, 0.0
          %v734 = vmax.f32 %v718, 0.0
          %v735 = vmax.f32 %v719, 0.0
          %v736 = vmax.f32 %v720, 0.0
          %v737 = vmax.f32 %v721, 0.0
          %v738 = vmax.f32 %v722, 0.0
          %v739 = vmax.f32 %v723, 0.0
          %v740 = vmax.f32 %v724, 0.0
          %741 = vst [vmem:[%s345] sm:$0xff] %v725
          %742 = vst [vmem:[%s345 + $0x8] sm:$0xff] %v726
          %743 = vst [vmem:[%s345 + $0x10] sm:$0xff] %v727
          %744 = vst [vmem:[%s345 + $0x18] sm:$0xff] %v728
          %745 = vst [vmem:[%s345 + $0x20] sm:$0xff] %v729
          %746 = vst [vmem:[%s345 + $0x28] sm:$0xff] %v730
          %747 = vst [vmem:[%s345 + $0x30] sm:$0xff] %v731
          %748 = vst [vmem:[%s345 + $0x38] sm:$0xff] %v732
          %749 = vst [vmem:[%s345 + $0x40] sm:$0xff] %v733
          %750 = vst [vmem:[%s345 + $0x48] sm:$0xff] %v734
          %751 = vst [vmem:[%s345 + $0x50] sm:$0xff] %v735
          %752 = vst [vmem:[%s345 + $0x58] sm:$0xff] %v736
          %753 = vst [vmem:[%s345 + $0x60] sm:$0xff] %v737
          %754 = vst [vmem:[%s345 + $0x68] sm:$0xff] %v738
          %755 = vst [vmem:[%s345 + $0x70] sm:$0xff] %v739
          %756 = vst [vmem:[%s345 + $0x78] sm:$0xff] %v740
        $region56: #{tpu_custom_call.1} parent=31 // pred_fallthru
          _
        %s757 = sand.u32 %s170, 1
        %s758 = scalar_lea.sflag [#allocation9], %s757
        %s759 = sand.u32 %s170, 1
        %s760 = smul.addr %s759, 128
        %s761 = scalar_lea.vmem [#allocation13], %s760
        // Predicated region
        $region57: #{tpu_custom_call.1} parent=31 // pred_check
          %p762 = pneg %p180
        $region58: #{tpu_custom_call.1} parent=31 // pred_check_branch
          %764 = sbr.rel (%p762) target = $region60
        $region59: #{tpu_custom_call.1} parent=31 // pred_region
          %s765 = smul.u32 16, %s40
          %s767 = ssub.s32 2048, 2048
          %768 = vsyncadd %s758, %s767
          %s769 = smul.addr %s765, 128
          %s770 = scalar_lea.hbm %s6, %s769
          %s771 = sshll.u32 %s761, 4
          %s772 = int_to_ptr.vmem [resolvable:$true] %s771
          %777 = dma.vmem_to_hbm [thread:$0]  %s772, 2048, %s770, %s758, 128, 128, 8
        $region60: #{tpu_custom_call.1} parent=31 // pred_fallthru
          _
      $region32: #{tpu_custom_call.1} parent=5 // pred_fallthru
        _
      %p778 = scmp.le.s32.totalorder 2, %s31
      // Predicated region
      $region61: #{tpu_custom_call.1} parent=5 // pred_check
        %p779 = pneg %p778
      $region62: #{tpu_custom_call.1} parent=5 // pred_check_branch
        %781 = sbr.rel (%p779) target = $region64
      $region63: #{tpu_custom_call.1} parent=5 // pred_region
        %s782 = ssub.s32 %s31, 2
        // Predicated region
        $region65: #{tpu_custom_call.1} parent=63 // pred_check
          %p783 = pneg %p186
        $region66: #{tpu_custom_call.1} parent=63 // pred_check_branch
          %785 = sbr.rel (%p783) target = $region68
        $region67: #{tpu_custom_call.1} parent=63 // pred_region
          %s786 = sand.u32 %s171, 1
          %s787 = scalar_lea.sflag [#allocation9], %s786
          %s788 = sand.u32 %s171, 1
          %s789 = smul.addr %s788, 128
          %s790 = scalar_lea.vmem [#allocation13], %s789
          %791 = dma.done %s787, 2048
        $region68: #{tpu_custom_call.1} parent=63 // pred_fallthru
          _
      $region64: #{tpu_custom_call.1} parent=5 // pred_fallthru
        _
    $region6: #{tpu_custom_call.1} parent=1 // loop_footer
      %s35 = sadd.s32 1, %s31
    $region7: #{tpu_custom_call.1} parent=1 // loop_footer_branch
      %30 = sbr.rel target = $region3
    $region8: #{tpu_custom_call.1} parent=1 // loop_exit
      _
    %792 = vsyncpa [#allocation8], 1
    %s793 = scalar_lea.sflag [#allocation8], 1
    %794 = vsyncpa %s793, 1
    %795 = vsyncpa [#allocation11], 1
    %s796 = scalar_lea.sflag [#allocation11], 1
    %797 = vsyncpa %s796, 1
    %798 = vsyncpa [#allocation9], 1
    %s799 = scalar_lea.sflag [#allocation9], 1
    %800 = vsyncpa %s799, 1

</llo_original>
